<compile_context>
chip_gen: v5e
topology: v5e:2x2
jax: 0.10.0
libtpu: 0.0.40
codegen_flags: <defaults>
</compile_context>

<pallas_src>
import math

import jax
import jax.numpy as jnp
from jax.experimental import pallas as pl
from jax.experimental.pallas import tpu as pltpu


def _round_up(x: int, m: int) -> int:
    return ((x + m - 1) // m) * m


def _make_two_store_kernel(half_dim: int, flip_sin_to_cos: bool):
    """C even and half_dim % 128 == 0: two aligned half-width stores."""

    def kernel(t_ref, freq_ref, out_ref):
        t = t_ref[...]                      # (TILE_N, 1) f32
        freqs = freq_ref[...]               # (1, half_dim) f32, scale folded in
        arg = t * freqs                     # rank-1 broadcast on the VPU
        sin_part = jnp.sin(arg)
        cos_part = jnp.cos(arg)
        if flip_sin_to_cos:
            first, second = cos_part, sin_part
        else:
            first, second = sin_part, cos_part
        out_ref[:, :half_dim] = first.astype(out_ref.dtype)
        out_ref[:, half_dim:] = second.astype(out_ref.dtype)

    return kernel


def _make_phase_kernel():
    """General case: single lane-dense full-width store via sin(x + phase).

    Table row 0 = per-column frequency (scale folded in, 0 for odd pad col),
    table row 1 = per-column phase (pi/2 on the cos half, 0 on the sin half
    and the odd pad column, so the pad column is sin(0) == 0).
    """

    def kernel(t_ref, tab_ref, out_ref):
        t = t_ref[...]                      # (TILE_N, 1) f32
        freqs = tab_ref[0:1, :]             # (1, C)
        phase = tab_ref[1:2, :]             # (1, C)
        arg = t * freqs + phase
        out_ref[...] = jnp.sin(arg).astype(out_ref.dtype)

    return kernel


class Timesteps:
    """JAX/Pallas equivalent of the PyTorch `Timesteps` module."""

    def __init__(self, num_channels: int, flip_sin_to_cos: bool,
                 downscale_freq_shift: float, scale: float = 1,
                 max_period: int = 10000, out_dtype=jnp.float32,
                 jax_fallback_bytes: int = 64 * 1024):
        assert num_channels >= 2, "num_channels must be >= 2"
        half_dim = num_channels // 2
        assert (half_dim - downscale_freq_shift) != 0, (
            "half_dim == downscale_freq_shift divides by zero (inherited from "
            "the PyTorch reference)")
        self.num_channels = num_channels
        self.flip_sin_to_cos = flip_sin_to_cos
        self.downscale_freq_shift = downscale_freq_shift
        self.scale = scale
        self.max_period = max_period
        # f32 matches the PyTorch reference; set bf16 if the consumer accepts
        # it (halves HBM writeback -> ~2x on writeback-bound v5e/v6e).
        self.out_dtype = out_dtype
        # Below this many output bytes, skip pallas_call and let XLA fuse the
        # pure-JAX formula into the consumer.  Set 0 to force the kernel.
        self.jax_fallback_bytes = jax_fallback_bytes

    # ---- pure-JAX path (tiny batches / fusion into consumer) -------------
    def _jax_path(self, timesteps):
        half = self.num_channels // 2
        exponent = (-math.log(self.max_period)
                    * jnp.arange(half, dtype=jnp.float32)
                    / (half - self.downscale_freq_shift))
        e = jnp.exp(exponent)
        emb = timesteps.astype(jnp.float32)[:, None] * e[None, :]
        emb = self.scale * emb
        emb = jnp.concatenate([jnp.sin(emb), jnp.cos(emb)], axis=-1)
        if self.flip_sin_to_cos:
            emb = jnp.concatenate([emb[:, half:], emb[:, :half]], axis=-1)
        if self.num_channels % 2 == 1:
            emb = jnp.pad(emb, ((0, 0), (0, 1)))
        return emb.astype(self.out_dtype)

    # ---- Pallas path ------------------------------------------------------
    def __call__(self, timesteps: jax.Array) -> jax.Array:
        assert timesteps.ndim == 1, "Timesteps should be a 1d-array"
        n = timesteps.shape[0]
        out_dim = self.num_channels
        half = out_dim // 2
        itemsize = jnp.dtype(self.out_dtype).itemsize

        if n * out_dim * itemsize < self.jax_fallback_bytes:
            # TODO(synk): fuse into the adjacent timestep-MLP Pallas kernel;
            # until then a fused XLA expression beats a kernel launch here.
            return self._jax_path(timesteps)

        # Frequency table, built with the same association as the reference
        # (exp(-ln(P) * k / (half - shift))) so args match bitwise, then
        # scale folded in (ulp-level reassociation; exact when scale == 1).
        denom = half - self.downscale_freq_shift
        exponent = (-math.log(self.max_period)
                    * jnp.arange(half, dtype=jnp.float32) / denom)
        e = jnp.exp(exponent)
        if self.scale != 1:
            e = e * jnp.float32(self.scale)

        aligned = (out_dim % 2 == 0) and (half % 128 == 0)
        if aligned:
            table = e.reshape(1, half)                       # (1, half)
            kernel = _make_two_store_kernel(half, self.flip_sin_to_cos)
        else:
            freqs_full = jnp.zeros((out_dim,), jnp.float32)
            freqs_full = freqs_full.at[:half].set(e).at[half:2 * half].set(e)
            sin_ph, cos_ph = 0.0, math.pi / 2.0
            if self.flip_sin_to_cos:
                first_ph, second_ph = cos_ph, sin_ph
            else:
                first_ph, second_ph = sin_ph, cos_ph
            phase_full = jnp.zeros((out_dim,), jnp.float32)
            phase_full = (phase_full.at[:half].set(first_ph)
                          .at[half:2 * half].set(second_ph))
            table = jnp.stack([freqs_full, phase_full])      # (2, C)
            kernel = _make_phase_kernel()

        # Row tiling: sublane alignment by dtype packing; cap the output tile
        # at ~2 MiB (fits double-buffered in every generation's default
        # scoped VMEM); guarantee >=2 grid steps when there is enough work so
        # v7x's two TensorCores both run.
        row_align = max(8, 32 // itemsize)          # 8 f32, 16 bf16, 32 int8
        cap_bytes = 2 * 1024 * 1024
        cap_rows = (cap_bytes // max(1, out_dim * itemsize)) // row_align * row_align
        cap_rows = int(min(max(cap_rows, row_align), 2048))
        if n <= 2 * row_align:
            tile_n = min(_round_up(n, row_align), cap_rows)
        else:
            tile_n = min(cap_rows, _round_up(pl.cdiv(n, 2), row_align))
        grid = (pl.cdiv(n, tile_n),)

        t2d = timesteps.astype(jnp.float32).reshape(n, 1)

        emb = pl.pallas_call(
            kernel,
            out_shape=jax.ShapeDtypeStruct((n, out_dim), self.out_dtype),
            grid=grid,
            in_specs=[
                pl.BlockSpec((tile_n, 1), lambda i: (i, 0)),
                # constant table: same block every step -> fetched once / core
                pl.BlockSpec(table.shape, lambda i: (0, 0)),
            ],
            out_specs=pl.BlockSpec((tile_n, out_dim), lambda i: (i, 0)),
            compiler_params=pltpu.CompilerParams(
                dimension_semantics=("parallel",)),
        )(t2d, table)
        return emb


# ---- reference (mirrors the PyTorch implementation) --------------------
def _reference(timesteps, num_channels, flip_sin_to_cos, downscale_freq_shift,
               scale=1.0, max_period=10000):
    half_dim = num_channels // 2
    exponent = (-math.log(max_period)
                * jnp.arange(half_dim, dtype=jnp.float32)
                / (half_dim - downscale_freq_shift))
    e = jnp.exp(exponent)
    emb = timesteps.astype(jnp.float32)[:, None] * e[None, :]
    emb = scale * emb
    emb = jnp.concatenate([jnp.sin(emb), jnp.cos(emb)], axis=-1)
    if flip_sin_to_cos:
        emb = jnp.concatenate([emb[:, half_dim:], emb[:, :half_dim]], axis=-1)
    if num_channels % 2 == 1:
        emb = jnp.pad(emb, ((0, 0), (0, 1)))
    return emb


if __name__ == "__main__":
    key = jax.random.PRNGKey(0)
    batch = 8
    num_channels = 256  # flux-style timestep embedding width

    # Fractional diffusion timesteps in [0, 1000)
    timesteps = jax.random.uniform(key, (batch,), dtype=jnp.float32) * 1000.0

    # 1) Pallas path, even C (aligned two half-width stores), flip=True.
    module = Timesteps(num_channels=num_channels, flip_sin_to_cos=True,
                       downscale_freq_shift=0.0, scale=1,
                       jax_fallback_bytes=0)   # force the Pallas kernel
    out = jax.block_until_ready(module(timesteps))
    ref = _reference(timesteps, num_channels, flip_sin_to_cos=True,
                     downscale_freq_shift=0.0)
    assert out.shape == (batch, num_channels)
    assert jnp.max(jnp.abs(out - ref)) < 1e-4

    # 2) Pallas path, odd C (lane-dense phase-trick store), flip=False.
    #    Smaller timesteps keep the sin(x + pi/2) argument-rounding
    #    perturbation far below the tolerance.
    odd_channels = 255
    t_small = jax.random.uniform(jax.random.PRNGKey(1), (batch,),
                                 dtype=jnp.float32) * 100.0
    module_odd = Timesteps(num_channels=odd_channels, flip_sin_to_cos=False,
                           downscale_freq_shift=1.0, scale=1,
                           jax_fallback_bytes=0)
    out_odd = jax.block_until_ready(module_odd(t_small))
    ref_odd = _reference(t_small, odd_channels, flip_sin_to_cos=False,
                         downscale_freq_shift=1.0)
    assert out_odd.shape == (batch, odd_channels)
    assert jnp.max(jnp.abs(out_odd - ref_odd)) < 1e-4

    # 3) Multi-tile Pallas path: >=2 grid steps + partial last block, no
    #    host-side pad/slice.
    n_big = 200
    t_big = jax.random.uniform(jax.random.PRNGKey(2), (n_big,),
                               dtype=jnp.float32) * 1000.0
    out_big = jax.block_until_ready(module(t_big))
    ref_big = _reference(t_big, num_channels, flip_sin_to_cos=True,
                         downscale_freq_shift=0.0)
    assert out_big.shape == (n_big, num_channels)
    assert jnp.max(jnp.abs(out_big - ref_big)) < 1e-4

    # 4) Default module: tiny-batch fast path (pure JAX, fused by XLA).
    module_default = Timesteps(num_channels=num_channels, flip_sin_to_cos=True,
                               downscale_freq_shift=0.0, scale=1)
    out_fb = jax.block_until_ready(module_default(timesteps))
    assert jnp.max(jnp.abs(out_fb - ref)) < 1e-4

    print("KERNEL_OK")
</pallas_src>

<mosaic_0001>
module attributes {stable_mosaic.version = 11 : i64} {
  func.func @kernel(%arg0: i32, %arg1: memref<8x1xf32, #tpu.memory_space<vmem>>, %arg2: memref<1x128xf32, #tpu.memory_space<vmem>>, %arg3: memref<8x256xf32, #tpu.memory_space<vmem>>) attributes {dimension_semantics = [#tpu.dimension_semantics<parallel>], iteration_bounds = array<i64: 1>, scalar_prefetch = 0 : i64, scratch_operands = 0 : i64, tpu.core_type = #tpu.core_type<tc>, window_params = [{transform_indices = @transform_0, window_bounds = array<i64: 8, 1>}, {pipeline_mode = #tpu.pipeline_mode<synchronous>, transform_indices = @transform_1, window_bounds = array<i64: 1, 128>}, {transform_indices = @transform_2, window_bounds = array<i64: 8, 256>}]} {
    %c0 = arith.constant 0 : index
    %c0_0 = arith.constant 0 : index
    %0 = vector.load %arg1[%c0, %c0_0] : memref<8x1xf32, #tpu.memory_space<vmem>>, vector<8x1xf32>
    %c0_1 = arith.constant 0 : index
    %c0_2 = arith.constant 0 : index
    %1 = vector.load %arg2[%c0_1, %c0_2] : memref<1x128xf32, #tpu.memory_space<vmem>>, vector<1x128xf32>
    %2 = vector.broadcast %0 : vector<8x1xf32> to vector<8x128xf32>
    %3 = vector.broadcast %1 : vector<1x128xf32> to vector<8x128xf32>
    %4 = arith.mulf %2, %3 : vector<8x128xf32>
    %5 = math.sin %4 : vector<8x128xf32>
    %6 = math.cos %4 : vector<8x128xf32>
    %c0_3 = arith.constant 0 : index
    %c0_4 = arith.constant 0 : index
    %7 = vector.load %arg3[%c0_3, %c0_4] : memref<8x256xf32, #tpu.memory_space<vmem>>, vector<8x128xf32>
    tpu.vector_store %arg3[%c0_3, %c0_4], %6 {strides = array<i32>} : memref<8x256xf32, #tpu.memory_space<vmem>>, vector<8x128xf32>,
    %c0_5 = arith.constant 0 : index
    %c128 = arith.constant 128 : index
    %8 = vector.load %arg3[%c0_5, %c128] : memref<8x256xf32, #tpu.memory_space<vmem>>, vector<8x128xf32>
    tpu.vector_store %arg3[%c0_5, %c128], %5 {strides = array<i32>} : memref<8x256xf32, #tpu.memory_space<vmem>>, vector<8x128xf32>,
    return
  }
  func.func @transform_0(%arg0: i32) -> (i32, i32) {
    %c0_i32 = arith.constant 0 : i32
    %c0_i32_0 = arith.constant 0 : i32
    return %arg0, %c0_i32 : i32, i32
  }
  func.func @transform_1(%arg0: i32) -> (i32, i32) {
    %c0_i32 = arith.constant 0 : i32
    %c0_i32_0 = arith.constant 0 : i32
    %c0_i32_1 = arith.constant 0 : i32
    return %c0_i32, %c0_i32_0 : i32, i32
  }
  func.func @transform_2(%arg0: i32) -> (i32, i32) {
    %c0_i32 = arith.constant 0 : i32
    %c0_i32_0 = arith.constant 0 : i32
    return %arg0, %c0_i32 : i32, i32
  }
}

</mosaic_0001>

<llo_original>
// kernel: tpu_custom_call.1
$region0: #{tpu_custom_call.1}
  #allocation0 [shape = 'u32[]', space=smem, size = 0x4, offset = 0x4, fixed_abs, tag = 'smem constant byte address 0x4 - core index']
  #allocation1 [shape = 'u32[72,128]{1,0:T(1,128)}', space=vmem, size = 0x9000, scoped, tag = 'internal scratch']
  %s0 = inlined_call_operand.vmem [shape: f32[8,1], index: 0, kind: input, shape index: {}]
  %s1 = inlined_call_operand.vmem [shape: f32[1,128], index: 1, kind: input, shape index: {}]
  %s2 = inlined_call_operand.hbm [shape: f32[8,256], index: 2, kind: output, shape index: {}]
  %s3 = sld [smem:[#allocation0]]
  $region18: #{tpu_custom_call.1} parent=0
    _
  %s5 = ssub.s32 1, %s3
  %s6 = scalar_select 0, %s5, %s3
  $region1: #{tpu_custom_call.1} parent=0
    #allocation2 [shape = 'u8[8192]{0}', space=vmem, size = 0x2000, scoped, tag = 'output window, operand 0, single buffered']
    #allocation3 [shape = 's32[1]{0}', space=sflag, size = 0x4, scoped, tag = 'scoped memory for tpu_custom_call.1']
    %7 = vsyncpa [#allocation3], 0
    // Predicated region
    $region2: #{tpu_custom_call.1} parent=1 // pred_check
      _
    $region3: #{tpu_custom_call.1} parent=1 // pred_check_branch
      %9 = sbr.rel (0) target = $region5
    $region4: #{tpu_custom_call.1} parent=1 // pred_region
      _
    $region5: #{tpu_custom_call.1} parent=1 // pred_fallthru
      _
    // Predicated region
    $region6: #{tpu_custom_call.1} parent=1 // pred_check
      _
    $region7: #{tpu_custom_call.1} parent=1 // pred_check_branch
      %11 = sbr.rel (0) target = $region9
    $region8: #{tpu_custom_call.1} parent=1 // pred_region
      _
    $region9: #{tpu_custom_call.1} parent=1 // pred_fallthru
      _
    %v12 = vld [vmem:[%s0] sm:$0xff]
    %v13 = vld [vmem:[%s1] sm:$0x1]
    %15 = vset.pattern.permute.xlu0 0
    %16 = vperm.xlu0 %15, %v12
    %v17 = vpop.permute.xlu0 %16
    %v20 = vperm.slane %v13, 0
    %v22 = vmul.f32 %v17, %v20
    %v23 = vand.u32 2147483647, %v22
    %vm24 = vcmp.le.f32.partialorder %v23, 0.7853982
    %vm25 = vcmp.lt.s32.totalorder %v22, 0
    %v26 = vand.u32 %v22, 2139095040
    %v27 = vshrl.u32 %v26, 23
    %v28 = vsub.s32 %v27, 127
    %v29 = vand.u32 2147483647, %v22
    %v30 = vand.u32 %v29, 8388607
    %v31 = vor.u32 %v30, 8388608
    %v32 = vsub.s32 0, %v31
    %v33 = vadd.s32 %v28, 1
    %vm34 = vcmp.gt.s32.totalorder %v33, 0
    %v35 = vsel %vm34, %v33, 0
    %v36 = vshrl.u32 %v35, 5
    %v37 = vand.u32 %v35, 31
    %v38 = vsub.s32 32, %v37
    %v39 = vshrl.u32 683565275, %v38
    %v40 = vshll.u32 683565275, %v37
    %v41 = vshrl.u32 2475754826, %v38
    %v42 = vor.u32 %v40, %v41
    %v43 = vshll.u32 2475754826, %v37
    %v44 = vshrl.u32 2131351028, %v38
    %v45 = vor.u32 %v43, %v44
    %v46 = vshll.u32 2131351028, %v37
    %v47 = vshrl.u32 2102212464, %v38
    %v48 = vor.u32 %v46, %v47
    %v49 = vshll.u32 2102212464, %v37
    %v50 = vshrl.u32 920167782, %v38
    %v51 = vor.u32 %v49, %v50
    %v52 = vshll.u32 920167782, %v37
    %v53 = vshrl.u32 1326507024, %v38
    %v54 = vor.u32 %v52, %v53
    %vm55 = vcmp.lt.s32.totalorder %v36, 1
    %vm56 = vcmp.lt.s32.totalorder %v36, 2
    %vm57 = vcmp.lt.s32.totalorder %v36, 3
    %vm58 = vcmp.lt.s32.totalorder %v36, 4
    %v59 = vsel %vm55, %v39, %v42
    %v60 = vsel %vm58, %v48, 2102212464
    %v61 = vsel %vm57, %v45, %v60
    %v62 = vsel %vm56, %v59, %v61
    %v63 = vsel %vm55, %v42, %v45
    %v64 = vsel %vm58, %v51, 920167782
    %v65 = vsel %vm57, %v48, %v64
    %v66 = vsel %vm56, %v63, %v65
    %v67 = vsel %vm55, %v45, %v48
    %v68 = vsel %vm58, %v54, 1326507024
    %v69 = vsel %vm57, %v51, %v68
    %v70 = vsel %vm56, %v67, %v69
    %v71 = vshll.u32 %v31, 8
    %v72 = vand.u32 %v71, 65535
    %v73 = vshrl.u32 %v71, 16
    %v74 = vand.u32 %v70, 65535
    %v75 = vshrl.u32 %v70, 16
    %v76 = vmul.u32 %v72, %v74
    %v77 = vmul.u32 %v72, %v75
    %v78 = vmul.u32 %v73, %v74
    %v79 = vmul.u32 %v73, %v75
    %v80 = vshll.u32 %v77, 16
    %v81 = vshrl.u32 %v77, 16
    %v82 = vshll.u32 %v78, 16
    %v83 = vshrl.u32 %v78, 16
    %vm84 = vc.u32 %v76, %v80
    %v85 = vsel %vm84, 1, 0
    %v86 = vadd.s32 %v76, %v80
    %v87 = vadd.s32 %v79, %v85
    %vm88 = vc.u32 %v86, %v82
    %v89 = vsel %vm88, 1, 0
    %v90 = vadd.s32 %v86, %v82
    %v91 = vadd.s32 %v87, %v89
    %v92 = vadd.s32 %v91, %v81
    %v93 = vadd.s32 %v92, %v83
    %v94 = vand.u32 %v71, 65535
    %v95 = vshrl.u32 %v71, 16
    %v96 = vand.u32 %v66, 65535
    %v97 = vshrl.u32 %v66, 16
    %v98 = vmul.u32 %v94, %v96
    %v99 = vmul.u32 %v94, %v97
    %v100 = vmul.u32 %v95, %v96
    %v101 = vmul.u32 %v95, %v97
    %v102 = vshll.u32 %v99, 16
    %v103 = vshrl.u32 %v99, 16
    %v104 = vshll.u32 %v100, 16
    %v105 = vshrl.u32 %v100, 16
    %vm106 = vc.u32 %v98, %v102
    %v107 = vsel %vm106, 1, 0
    %v108 = vadd.s32 %v98, %v102
    %v109 = vadd.s32 %v101, %v107
    %vm110 = vc.u32 %v108, %v104
    %v111 = vsel %vm110, 1, 0
    %v112 = vadd.s32 %v108, %v104
    %v113 = vadd.s32 %v109, %v111
    %v114 = vadd.s32 %v113, %v103
    %v115 = vadd.s32 %v114, %v105
    %v116 = vmul.u32 %v71, %v62
    %v117 = vadd.s32 %v93, %v112
    %vm118 = vc.u32 %v93, %v112
    %v119 = vadd.s32 %v115, 1
    %v120 = vsel %vm118, %v119, %v115
    %v121 = vadd.s32 %v116, %v120
    %v122 = vadd.s32 %v121, 536870912
    %v123 = vshrl.u32 %v122, 30
    %v124 = vshll.u32 %v123, 30
    %v125 = vsub.s32 %v121, %v124
    %vm126 = vcmp.lt.s32.totalorder %v125, 0
    %v127 = vsub.s32 0, %v125
    %v128 = vsel %vm126, %v127, %v125
    %v129 = vclz %v128
    %v130 = vsub.s32 %v129, 2
    %vm131 = vcmp.gt.s32.totalorder 0, %v130
    %v132 = vsel %vm131, 0, %v130
    %v133 = vsub.s32 32, %v132
    %v134 = vshll.u32 %v125, %v132
    %v135 = vshrl.u32 %v117, %v133
    %v136 = vor.u32 %v134, %v135
    %v137 = vsub.s32 4294967266, %v132
    %v138 = vadd.s32 %v137, 127
    %v139 = vshll.u32 %v138, 23
    %v140 = vor.u32 4788187, %v139
    %v141 = vand.u32 2147483647, %v140
    %v143 = vcvt.s32.f32 %v136
    %v144 = vmul.f32 %v143, %v141
    %v145 = vxor.u32 %v144, 2147483648
    %v146 = vsel %vm25, %v145, %v144
    %v147 = vsub.s32 4, %v123
    %v148 = vsel %vm25, %v147, %v123
    %v149 = vsel %vm24, %v22, %v146
    %v150 = vsel %vm24, 0, %v148
    %v151 = vmul.f32 %v149, %v149
    %v152 = vmul.f32 %v151, -0.001358992
    %v153 = vadd.f32 %v152, 0.041655596
    %v154 = vmul.f32 %v151, %v153
    %v155 = vadd.f32 %v154, -0.4999988
    %v156 = vmul.f32 %v151, %v155
    %v157 = vadd.f32 1.0, %v156
    %v158 = vmul.f32 %v149, %v149
    %v159 = vmul.f32 %v158, -0.00019511016
    %v160 = vadd.f32 %v159, 0.008332121
    %v161 = vmul.f32 %v158, %v160
    %v162 = vadd.f32 %v161, -0.16666654
    %v163 = vmul.f32 %v158, %v162
    %v164 = vadd.f32 %v163, 1.0
    %v165 = vmul.f32 %v164, %v149
    %vm166 = vweird.f32 %v22
    %v167 = vadd.s32 %v150, 3
    %v168 = vand.u32 %v167, 3
    %vm169 = vcmp.lt.s32.totalorder %v168, 2
    %vm170 = vcmp.eq.s32.totalorder %v168, 0
    %v171 = vxor.u32 %v165, 2147483648
    %v172 = vsel %vm170, %v157, %v171
    %vm173 = vcmp.eq.s32.totalorder %v168, 2
    %v174 = vxor.u32 %v157, 2147483648
    %v175 = vsel %vm173, %v174, %v165
    %v176 = vsel %vm169, %v172, %v175
    %v177 = vsel %vm166, nan, %v176
    %v178 = vand.u32 2147483647, %v22
    %vm179 = vcmp.le.f32.partialorder %v178, 0.7853982
    %vm180 = vcmp.lt.s32.totalorder %v22, 0
    %v181 = vand.u32 %v22, 2139095040
    %v182 = vshrl.u32 %v181, 23
    %v183 = vsub.s32 %v182, 127
    %v184 = vand.u32 2147483647, %v22
    %v185 = vand.u32 %v184, 8388607
    %v186 = vor.u32 %v185, 8388608
    %v187 = vsub.s32 0, %v186
    %v188 = vadd.s32 %v183, 1
    %vm189 = vcmp.gt.s32.totalorder %v188, 0
    %v190 = vsel %vm189, %v188, 0
    %v191 = vshrl.u32 %v190, 5
    %v192 = vand.u32 %v190, 31
    %v193 = vsub.s32 32, %v192
    %v194 = vshrl.u32 683565275, %v193
    %v195 = vshll.u32 683565275, %v192
    %v196 = vshrl.u32 2475754826, %v193
    %v197 = vor.u32 %v195, %v196
    %v198 = vshll.u32 2475754826, %v192
    %v199 = vshrl.u32 2131351028, %v193
    %v200 = vor.u32 %v198, %v199
    %v201 = vshll.u32 2131351028, %v192
    %v202 = vshrl.u32 2102212464, %v193
    %v203 = vor.u32 %v201, %v202
    %v204 = vshll.u32 2102212464, %v192
    %v205 = vshrl.u32 920167782, %v193
    %v206 = vor.u32 %v204, %v205
    %v207 = vshll.u32 920167782, %v192
    %v208 = vshrl.u32 1326507024, %v193
    %v209 = vor.u32 %v207, %v208
    %vm210 = vcmp.lt.s32.totalorder %v191, 1
    %vm211 = vcmp.lt.s32.totalorder %v191, 2
    %vm212 = vcmp.lt.s32.totalorder %v191, 3
    %vm213 = vcmp.lt.s32.totalorder %v191, 4
    %v214 = vsel %vm210, %v194, %v197
    %v215 = vsel %vm213, %v203, 2102212464
    %v216 = vsel %vm212, %v200, %v215
    %v217 = vsel %vm211, %v214, %v216
    %v218 = vsel %vm210, %v197, %v200
    %v219 = vsel %vm213, %v206, 920167782
    %v220 = vsel %vm212, %v203, %v219
    %v221 = vsel %vm211, %v218, %v220
    %v222 = vsel %vm210, %v200, %v203
    %v223 = vsel %vm213, %v209, 1326507024
    %v224 = vsel %vm212, %v206, %v223
    %v225 = vsel %vm211, %v222, %v224
    %v226 = vshll.u32 %v186, 8
    %v227 = vand.u32 %v226, 65535
    %v228 = vshrl.u32 %v226, 16
    %v229 = vand.u32 %v225, 65535
    %v230 = vshrl.u32 %v225, 16
    %v231 = vmul.u32 %v227, %v229
    %v232 = vmul.u32 %v227, %v230
    %v233 = vmul.u32 %v228, %v229
    %v234 = vmul.u32 %v228, %v230
    %v235 = vshll.u32 %v232, 16
    %v236 = vshrl.u32 %v232, 16
    %v237 = vshll.u32 %v233, 16
    %v238 = vshrl.u32 %v233, 16
    %vm239 = vc.u32 %v231, %v235
    %v240 = vsel %vm239, 1, 0
    %v241 = vadd.s32 %v231, %v235
    %v242 = vadd.s32 %v234, %v240
    %vm243 = vc.u32 %v241, %v237
    %v244 = vsel %vm243, 1, 0
    %v245 = vadd.s32 %v241, %v237
    %v246 = vadd.s32 %v242, %v244
    %v247 = vadd.s32 %v246, %v236
    %v248 = vadd.s32 %v247, %v238
    %v249 = vand.u32 %v226, 65535
    %v250 = vshrl.u32 %v226, 16
    %v251 = vand.u32 %v221, 65535
    %v252 = vshrl.u32 %v221, 16
    %v253 = vmul.u32 %v249, %v251
    %v254 = vmul.u32 %v249, %v252
    %v255 = vmul.u32 %v250, %v251
    %v256 = vmul.u32 %v250, %v252
    %v257 = vshll.u32 %v254, 16
    %v258 = vshrl.u32 %v254, 16
    %v259 = vshll.u32 %v255, 16
    %v260 = vshrl.u32 %v255, 16
    %vm261 = vc.u32 %v253, %v257
    %v262 = vsel %vm261, 1, 0
    %v263 = vadd.s32 %v253, %v257
    %v264 = vadd.s32 %v256, %v262
    %vm265 = vc.u32 %v263, %v259
    %v266 = vsel %vm265, 1, 0
    %v267 = vadd.s32 %v263, %v259
    %v268 = vadd.s32 %v264, %v266
    %v269 = vadd.s32 %v268, %v258
    %v270 = vadd.s32 %v269, %v260
    %v271 = vmul.u32 %v226, %v217
    %v272 = vadd.s32 %v248, %v267
    %vm273 = vc.u32 %v248, %v267
    %v274 = vadd.s32 %v270, 1
    %v275 = vsel %vm273, %v274, %v270
    %v276 = vadd.s32 %v271, %v275
    %v277 = vadd.s32 %v276, 536870912
    %v278 = vshrl.u32 %v277, 30
    %v279 = vshll.u32 %v278, 30
    %v280 = vsub.s32 %v276, %v279
    %vm281 = vcmp.lt.s32.totalorder %v280, 0
    %v282 = vsub.s32 0, %v280
    %v283 = vsel %vm281, %v282, %v280
    %v284 = vclz %v283
    %v285 = vsub.s32 %v284, 2
    %vm286 = vcmp.gt.s32.totalorder 0, %v285
    %v287 = vsel %vm286, 0, %v285
    %v288 = vsub.s32 32, %v287
    %v289 = vshll.u32 %v280, %v287
    %v290 = vshrl.u32 %v272, %v288
    %v291 = vor.u32 %v289, %v290
    %v292 = vsub.s32 4294967266, %v287
    %v293 = vadd.s32 %v292, 127
    %v294 = vshll.u32 %v293, 23
    %v295 = vor.u32 4788187, %v294
    %v296 = vand.u32 2147483647, %v295
    %v298 = vcvt.s32.f32 %v291
    %v299 = vmul.f32 %v298, %v296
    %v300 = vxor.u32 %v299, 2147483648
    %v301 = vsel %vm180, %v300, %v299
    %v302 = vsub.s32 4, %v278
    %v303 = vsel %vm180, %v302, %v278
    %v304 = vsel %vm179, %v22, %v301
    %v305 = vsel %vm179, 0, %v303
    %v306 = vmul.f32 %v304, %v304
    %v307 = vmul.f32 %v306, -0.001358992
    %v308 = vadd.f32 %v307, 0.041655596
    %v309 = vmul.f32 %v306, %v308
    %v310 = vadd.f32 %v309, -0.4999988
    %v311 = vmul.f32 %v306, %v310
    %v312 = vadd.f32 1.0, %v311
    %v313 = vmul.f32 %v304, %v304
    %v314 = vmul.f32 %v313, -0.00019511016
    %v315 = vadd.f32 %v314, 0.008332121
    %v316 = vmul.f32 %v313, %v315
    %v317 = vadd.f32 %v316, -0.16666654
    %v318 = vmul.f32 %v313, %v317
    %v319 = vadd.f32 %v318, 1.0
    %v320 = vmul.f32 %v319, %v304
    %vm321 = vweird.f32 %v22
    %v322 = vand.u32 %v305, 3
    %vm323 = vcmp.lt.s32.totalorder %v322, 2
    %vm324 = vcmp.eq.s32.totalorder %v322, 0
    %v325 = vxor.u32 %v320, 2147483648
    %v326 = vsel %vm324, %v312, %v325
    %vm327 = vcmp.eq.s32.totalorder %v322, 2
    %v328 = vxor.u32 %v312, 2147483648
    %v329 = vsel %vm327, %v328, %v320
    %v330 = vsel %vm323, %v326, %v329
    %v331 = vsel %vm321, nan, %v330
    %332 = vst [vmem:[#allocation2] sm:$0xff] %v331
    %333 = vst [vmem:[#allocation2 + $0x8] sm:$0xff] %v177
    // Predicated region
    $region10: #{tpu_custom_call.1} parent=1 // pred_check
      _
    $region11: #{tpu_custom_call.1} parent=1 // pred_check_branch
      %335 = sbr.rel (0) target = $region13
    $region12: #{tpu_custom_call.1} parent=1 // pred_region
      %337 = vsyncadd [#allocation3], 0
      %s339 = sshll.u32 [#allocation2], 4
      %s340 = int_to_ptr.vmem [resolvable:$true] %s339
      %s341 = sshll.u32 %s2, 4
      %s342 = int_to_ptr.hbm [resolvable:$true] %s341
      %344 = dma.vmem_to_hbm [thread:$0]  %s340, 256, %s342, [#allocation3]
    $region13: #{tpu_custom_call.1} parent=1 // pred_fallthru
      _
    // Predicated region
    $region14: #{tpu_custom_call.1} parent=1 // pred_check
      _
    $region15: #{tpu_custom_call.1} parent=1 // pred_check_branch
      %346 = sbr.rel (0) target = $region17
    $region16: #{tpu_custom_call.1} parent=1 // pred_region
      %348 = dma.done [#allocation3], 256
    $region17: #{tpu_custom_call.1} parent=1 // pred_fallthru
      _
    %349 = vsyncpa [#allocation3], 1

</llo_original>
